<compile_context>
chip_gen: v5e
topology: v5e:2x2
jax: 0.10.0
libtpu: 0.0.40
codegen_flags: <defaults>
</compile_context>

<pallas_src>
import jax
import jax.numpy as jnp
from jax.experimental import pallas as pl
from jax.experimental.pallas import tpu as pltpu

INPUT_SIZE = 5
HIDDEN = 32
FC1 = 256

XPAD = 8                          # input width padded to one f32 sublane group (bias column folded in)
MAX_B_TILE = 64                   # keep h/c/gates + W_hh resident in the 64-entry vreg file
VMEM_X_BUDGET = 8 * 1024 * 1024   # conservative; fits v5e's 16 MiB default scoped-VMEM limit


def lstm_model_kernel(x_ref,      # (T, Bt, 8)  time-major inputs; col 5 = 1.0 (bias), cols 6..7 = 0
                      wih_ref,    # (8, 4H) f32  [W_ih ; b_ih+b_hh ; 0 ; 0], g-columns pre-scaled by 2
                      whh_ref,    # (H, 4H) bf16, g-columns pre-scaled by 2
                      wfc1_ref,   # (H, F1) bf16
                      bfc1_ref,   # (1, F1) f32
                      wout_ref,   # (1, F1) f32   out_layer.weight as a row
                      bout_ref,   # (1, 1)  f32
                      o_ref):     # (Bt, 1) f32
    T, Bt, _ = x_ref.shape
    H = whh_ref.shape[0]

    wih = wih_ref[...]            # hoist weight loads out of the unrolled loop
    whh = whh_ref[...]

    h = jnp.zeros((Bt, H), jnp.float32)
    c = jnp.zeros((Bt, H), jnp.float32)

    # Fully unrolled recurrence (T is a small compile-time constant).
    for t in range(T):
        # Input projection + bias (via the ones column). Independent of h, so it sits
        # off the serial critical path and overlaps with the previous step's gate math.
        gx = jnp.dot(x_ref[t], wih, preferred_element_type=jnp.float32)           # (Bt, 4H)
        gates = gx + jnp.dot(h.astype(jnp.bfloat16), whh,
                             preferred_element_type=jnp.float32)                  # (Bt, 4H)

        # Single EUP pass over the full 4H-wide vreg (PyTorch gate order i, f, g, o).
        # g-gate pre-activations arrive pre-scaled by 2, so tanh(x_g) = 2*sigmoid(2*x_g) - 1
        # is recovered with one quarter-width VPU fixup (no tanh pass, no lane mask).
        act = jax.nn.sigmoid(gates)
        i_g = act[:, 0 * H:1 * H]
        f_g = act[:, 1 * H:2 * H]
        g_g = act[:, 2 * H:3 * H] * 2.0 - 1.0
        o_g = act[:, 3 * H:4 * H]

        c = f_g * c + i_g * g_g
        h = o_g * jnp.tanh(c)

    # Head: fc1 -> ReLU -> Dropout (identity in eval) -> out_layer.
    # TODO(synk): training-mode dropout (p=0.2) not implemented; eval semantics used.
    z = jnp.dot(h.astype(jnp.bfloat16), wfc1_ref[...],
                preferred_element_type=jnp.float32) + bfc1_ref[...]               # (Bt, F1)
    z = jnp.maximum(z, 0.0)
    # N=1 matmul expressed as VPU multiply + lane reduction.
    o_ref[...] = (jnp.sum(z * wout_ref[...], axis=-1, keepdims=True)
                  + bout_ref[...]).astype(o_ref.dtype)


def _round_up(x, m):
    return ((x + m - 1) // m) * m


@jax.jit
def lstm_model_forward(x, kp):
    """x: (B, T, 5) float32, batch_first like PyTorch. kp: prepared kernel params. Returns (B, 1)."""
    B, T, I = x.shape

    # Time-major layout + constant 1.0 "bias" column + zero-pad input width to 8 lanes.
    xt = jnp.transpose(x, (1, 0, 2))                                              # (T, B, I)
    xt = jnp.concatenate(
        [xt, jnp.ones((T, B, 1), xt.dtype), jnp.zeros((T, B, XPAD - I - 1), xt.dtype)],
        axis=-1)                                                                  # (T, B, 8)

    # Batch tile: multiple of 8 sublanes, <= MAX_B_TILE (vreg pressure), fits the
    # double-buffered (T, Bt, 128-lane-padded) block in a conservative VMEM budget,
    # and gives >= 2 grid tiles once B >= 16 so both v7x TensorCores get work.
    B8 = _round_up(B, 8)
    b_vmem = max(8, (VMEM_X_BUDGET // (2 * T * 128 * 4)) // 8 * 8)
    b_split = _round_up(pl.cdiv(B8, 2), 8)
    B_TILE = max(8, min(MAX_B_TILE, b_vmem, b_split))
    B_pad = _round_up(B8, B_TILE)
    if B_pad != B:
        xt = jnp.pad(xt, ((0, 0), (0, B_pad - B), (0, 0)))

    grid = (B_pad // B_TILE,)
    full = lambda a: pl.BlockSpec(a.shape, lambda b, _nd=a.ndim: (0,) * _nd)

    out = pl.pallas_call(
        lstm_model_kernel,
        out_shape=jax.ShapeDtypeStruct((B_pad, 1), jnp.float32),
        grid=grid,
        in_specs=[
            pl.BlockSpec((T, B_TILE, XPAD), lambda b: (0, b, 0)),
            full(kp["w_ihb"]),
            full(kp["w_hh"]),
            full(kp["w_fc1"]),
            full(kp["b_fc1"]),
            full(kp["w_out"]),
            full(kp["b_out"]),
        ],
        out_specs=pl.BlockSpec((B_TILE, 1), lambda b: (b, 0)),
        compiler_params=pltpu.CompilerParams(dimension_semantics=("parallel",)),
    )(xt, kp["w_ihb"], kp["w_hh"], kp["w_fc1"], kp["b_fc1"], kp["w_out"], kp["b_out"])

    return out[:B]


def init_params(key):
    """Deterministic raw parameters (PyTorch semantics, stored transposed: (in, out))."""
    ks = jax.random.split(key, 8)
    kH = 1.0 / jnp.sqrt(HIDDEN)
    kF = 1.0 / jnp.sqrt(FC1)

    def u(k, shape, bound):
        return jax.random.uniform(k, shape, jnp.float32, -bound, bound)

    return {
        "w_ih": u(ks[0], (INPUT_SIZE, 4 * HIDDEN), kH),   # weight_ih_l0^T, gate order i,f,g,o
        "w_hh": u(ks[1], (HIDDEN, 4 * HIDDEN), kH),       # weight_hh_l0^T
        "b_ih": u(ks[2], (4 * HIDDEN,), kH),
        "b_hh": u(ks[3], (4 * HIDDEN,), kH),
        "w_fc1": u(ks[4], (HIDDEN, FC1), kH),             # fc1.weight^T
        "b_fc1": u(ks[5], (FC1,), kH),
        "w_out": u(ks[6], (1, FC1), kF),                  # out_layer.weight (kept as a row)
        "b_out": u(ks[7], (1,), kF),
    }


def prepare_params(raw):
    """Fold raw params into kernel form.

    * g-gate columns (2H:3H) of W_ih / W_hh and of (b_ih + b_hh) scaled by 2 so the kernel
      can use a single sigmoid pass (tanh(x) = 2*sigmoid(2x) - 1).
    * combined bias folded into row 5 of the (8, 4H) input-projection weight (x gets a
      constant 1.0 column); rows 6..7 are zero padding.
    * recurrent / fc1 weights cast to bf16 for single-pass MXU matmuls (f32 accumulation).
    A checkpoint loader must replicate these transforms exactly.
    """
    H = HIDDEN
    col = jnp.arange(4 * H)
    gscale = jnp.where((col >= 2 * H) & (col < 3 * H), 2.0, 1.0).astype(jnp.float32)

    b = (raw["b_ih"] + raw["b_hh"]) * gscale                                      # (4H,)
    w_ih = raw["w_ih"] * gscale                                                   # (I, 4H)
    w_hh = raw["w_hh"] * gscale                                                   # (H, 4H)
    w_ihb = jnp.concatenate(
        [w_ih, b[None, :], jnp.zeros((XPAD - INPUT_SIZE - 1, 4 * H), jnp.float32)],
        axis=0)                                                                   # (8, 4H)

    return {
        "w_ihb": w_ihb.astype(jnp.float32),
        "w_hh": w_hh.astype(jnp.bfloat16),
        "w_fc1": raw["w_fc1"].astype(jnp.bfloat16),
        "b_fc1": raw["b_fc1"].reshape(1, FC1).astype(jnp.float32),
        "w_out": raw["w_out"].reshape(1, FC1).astype(jnp.float32),
        "b_out": raw["b_out"].reshape(1, 1).astype(jnp.float32),
    }


def lstm_model_reference(x, raw):
    """Pure-JAX f32 reference with PyTorch LSTM semantics (eval mode)."""
    B, T, _ = x.shape
    H = HIDDEN
    b = raw["b_ih"] + raw["b_hh"]
    h = jnp.zeros((B, H), jnp.float32)
    c = jnp.zeros((B, H), jnp.float32)
    for t in range(T):
        g = x[:, t, :] @ raw["w_ih"] + h @ raw["w_hh"] + b
        i = jax.nn.sigmoid(g[:, 0 * H:1 * H])
        f = jax.nn.sigmoid(g[:, 1 * H:2 * H])
        gg = jnp.tanh(g[:, 2 * H:3 * H])
        o = jax.nn.sigmoid(g[:, 3 * H:4 * H])
        c = f * c + i * gg
        h = o * jnp.tanh(c)
    z = jnp.maximum(h @ raw["w_fc1"] + raw["b_fc1"], 0.0)
    return jnp.sum(z * raw["w_out"], axis=-1, keepdims=True) + raw["b_out"]


if __name__ == "__main__":
    key = jax.random.PRNGKey(0)
    pkey, xkey = jax.random.split(key)
    raw = init_params(pkey)
    kparams = prepare_params(raw)

    B, T = 2, 8
    x = jax.random.normal(xkey, (B, T, INPUT_SIZE), jnp.float32)

    y = lstm_model_forward(x, kparams)
    jax.block_until_ready(y)
    assert y.shape == (B, 1), y.shape

    y_ref = lstm_model_reference(x, raw)
    assert jnp.allclose(y, y_ref, atol=2e-2, rtol=2e-2), (y, y_ref)
    print("KERNEL_OK")
</pallas_src>

<mosaic_0001>
module attributes {stable_mosaic.version = 11 : i64} {
  func.func @lstm_model_kernel(%arg0: i32, %arg1: memref<8x8x8xf32, #tpu.memory_space<vmem>>, %arg2: memref<8x128xf32, #tpu.memory_space<vmem>>, %arg3: memref<32x128xbf16, #tpu.memory_space<vmem>>, %arg4: memref<32x256xbf16, #tpu.memory_space<vmem>>, %arg5: memref<1x256xf32, #tpu.memory_space<vmem>>, %arg6: memref<1x256xf32, #tpu.memory_space<vmem>>, %arg7: memref<1x1xf32, #tpu.memory_space<vmem>>, %arg8: memref<8x1xf32, #tpu.memory_space<vmem>>) attributes {dimension_semantics = [#tpu.dimension_semantics<parallel>], iteration_bounds = array<i64: 1>, scalar_prefetch = 0 : i64, scratch_operands = 0 : i64, tpu.core_type = #tpu.core_type<tc>, window_params = [{transform_indices = @transform_0, window_bounds = array<i64: 8, 8, 8>}, {pipeline_mode = #tpu.pipeline_mode<synchronous>, transform_indices = @transform_1, window_bounds = array<i64: 8, 128>}, {pipeline_mode = #tpu.pipeline_mode<synchronous>, transform_indices = @transform_2, window_bounds = array<i64: 32, 128>}, {pipeline_mode = #tpu.pipeline_mode<synchronous>, transform_indices = @transform_3, window_bounds = array<i64: 32, 256>}, {pipeline_mode = #tpu.pipeline_mode<synchronous>, transform_indices = @transform_4, window_bounds = array<i64: 1, 256>}, {pipeline_mode = #tpu.pipeline_mode<synchronous>, transform_indices = @transform_5, window_bounds = array<i64: 1, 256>}, {pipeline_mode = #tpu.pipeline_mode<synchronous>, transform_indices = @transform_6, window_bounds = array<i64: 1, 1>}, {transform_indices = @transform_7, window_bounds = array<i64: 8, 1>}]} {
    %c0 = arith.constant 0 : index
    %c0_0 = arith.constant 0 : index
    %0 = vector.load %arg2[%c0, %c0_0] : memref<8x128xf32, #tpu.memory_space<vmem>>, vector<8x128xf32>
    %c0_1 = arith.constant 0 : index
    %c0_2 = arith.constant 0 : index
    %1 = vector.load %arg3[%c0_1, %c0_2] : memref<32x128xbf16, #tpu.memory_space<vmem>>, vector<32x128xbf16>
    %cst = arith.constant 0.000000e+00 : f32
    %2 = vector.broadcast %cst : f32 to vector<8x32xf32>
    %cst_3 = arith.constant 0.000000e+00 : f32
    %3 = vector.broadcast %cst_3 : f32 to vector<8x32xf32>
    %c0_4 = arith.constant 0 : index
    %c0_5 = arith.constant 0 : index
    %c0_6 = arith.constant 0 : index
    %4 = vector.load %arg1[%c0_4, %c0_5, %c0_6] : memref<8x8x8xf32, #tpu.memory_space<vmem>>, vector<1x8x8xf32>
    %5 = vector.shape_cast %4 : vector<1x8x8xf32> to vector<8x8xf32>
    %cst_7 = arith.constant dense<0.000000e+00> : vector<8x128xf32>
    %6 = tpu.matmul %5, %0, %cst_7 {dimension_numbers = #tpu.dot_dimension_numbers<[1], [0], [0], [1], [0, 0, 1, 1], [], []>} : vector<8x8xf32>, vector<8x128xf32>, vector<8x128xf32> -> vector<8x128xf32>
    %7 = arith.truncf %2 : vector<8x32xf32> to vector<8x32xbf16>
    %cst_8 = arith.constant dense<0.000000e+00> : vector<8x128xf32>
    %8 = tpu.matmul %7, %1, %cst_8 {dimension_numbers = #tpu.dot_dimension_numbers<[1], [0], [0], [1], [0, 0, 1, 1], [], []>} : vector<8x32xbf16>, vector<32x128xbf16>, vector<8x128xf32> -> vector<8x128xf32>
    %9 = arith.addf %6, %8 : vector<8x128xf32>
    %10 = arith.negf %9 : vector<8x128xf32>
    %11 = math.exp %10 : vector<8x128xf32>
    %cst_9 = arith.constant 1.000000e+00 : f32
    %12 = vector.broadcast %cst_9 : f32 to vector<8x128xf32>
    %13 = arith.addf %12, %11 : vector<8x128xf32>
    %14 = arith.divf %12, %13 : vector<8x128xf32>
    %15 = vector.extract_strided_slice %14 {offsets = [0, 0], sizes = [8, 32], strides = [1, 1]} : vector<8x128xf32> to vector<8x32xf32>
    %16 = vector.extract_strided_slice %14 {offsets = [0, 32], sizes = [8, 32], strides = [1, 1]} : vector<8x128xf32> to vector<8x32xf32>
    %17 = vector.extract_strided_slice %14 {offsets = [0, 64], sizes = [8, 32], strides = [1, 1]} : vector<8x128xf32> to vector<8x32xf32>
    %cst_10 = arith.constant 2.000000e+00 : f32
    %18 = vector.broadcast %cst_10 : f32 to vector<8x32xf32>
    %19 = arith.mulf %17, %18 : vector<8x32xf32>
    %cst_11 = arith.constant 1.000000e+00 : f32
    %20 = vector.broadcast %cst_11 : f32 to vector<8x32xf32>
    %21 = arith.subf %19, %20 : vector<8x32xf32>
    %22 = vector.extract_strided_slice %14 {offsets = [0, 96], sizes = [8, 32], strides = [1, 1]} : vector<8x128xf32> to vector<8x32xf32>
    %23 = arith.mulf %16, %3 : vector<8x32xf32>
    %24 = arith.mulf %15, %21 : vector<8x32xf32>
    %25 = arith.addf %23, %24 : vector<8x32xf32>
    %26 = math.tanh %25 : vector<8x32xf32>
    %27 = arith.mulf %22, %26 : vector<8x32xf32>
    %c1 = arith.constant 1 : index
    %c0_12 = arith.constant 0 : index
    %c0_13 = arith.constant 0 : index
    %28 = vector.load %arg1[%c1, %c0_12, %c0_13] : memref<8x8x8xf32, #tpu.memory_space<vmem>>, vector<1x8x8xf32>
    %29 = vector.shape_cast %28 : vector<1x8x8xf32> to vector<8x8xf32>
    %cst_14 = arith.constant dense<0.000000e+00> : vector<8x128xf32>
    %30 = tpu.matmul %29, %0, %cst_14 {dimension_numbers = #tpu.dot_dimension_numbers<[1], [0], [0], [1], [0, 0, 1, 1], [], []>} : vector<8x8xf32>, vector<8x128xf32>, vector<8x128xf32> -> vector<8x128xf32>
    %31 = arith.truncf %27 : vector<8x32xf32> to vector<8x32xbf16>
    %cst_15 = arith.constant dense<0.000000e+00> : vector<8x128xf32>
    %32 = tpu.matmul %31, %1, %cst_15 {dimension_numbers = #tpu.dot_dimension_numbers<[1], [0], [0], [1], [0, 0, 1, 1], [], []>} : vector<8x32xbf16>, vector<32x128xbf16>, vector<8x128xf32> -> vector<8x128xf32>
    %33 = arith.addf %30, %32 : vector<8x128xf32>
    %34 = arith.negf %33 : vector<8x128xf32>
    %35 = math.exp %34 : vector<8x128xf32>
    %cst_16 = arith.constant 1.000000e+00 : f32
    %36 = vector.broadcast %cst_16 : f32 to vector<8x128xf32>
    %37 = arith.addf %36, %35 : vector<8x128xf32>
    %38 = arith.divf %36, %37 : vector<8x128xf32>
    %39 = vector.extract_strided_slice %38 {offsets = [0, 0], sizes = [8, 32], strides = [1, 1]} : vector<8x128xf32> to vector<8x32xf32>
    %40 = vector.extract_strided_slice %38 {offsets = [0, 32], sizes = [8, 32], strides = [1, 1]} : vector<8x128xf32> to vector<8x32xf32>
    %41 = vector.extract_strided_slice %38 {offsets = [0, 64], sizes = [8, 32], strides = [1, 1]} : vector<8x128xf32> to vector<8x32xf32>
    %cst_17 = arith.constant 2.000000e+00 : f32
    %42 = vector.broadcast %cst_17 : f32 to vector<8x32xf32>
    %43 = arith.mulf %41, %42 : vector<8x32xf32>
    %cst_18 = arith.constant 1.000000e+00 : f32
    %44 = vector.broadcast %cst_18 : f32 to vector<8x32xf32>
    %45 = arith.subf %43, %44 : vector<8x32xf32>
    %46 = vector.extract_strided_slice %38 {offsets = [0, 96], sizes = [8, 32], strides = [1, 1]} : vector<8x128xf32> to vector<8x32xf32>
    %47 = arith.mulf %40, %25 : vector<8x32xf32>
    %48 = arith.mulf %39, %45 : vector<8x32xf32>
    %49 = arith.addf %47, %48 : vector<8x32xf32>
    %50 = math.tanh %49 : vector<8x32xf32>
    %51 = arith.mulf %46, %50 : vector<8x32xf32>
    %c2 = arith.constant 2 : index
    %c0_19 = arith.constant 0 : index
    %c0_20 = arith.constant 0 : index
    %52 = vector.load %arg1[%c2, %c0_19, %c0_20] : memref<8x8x8xf32, #tpu.memory_space<vmem>>, vector<1x8x8xf32>
    %53 = vector.shape_cast %52 : vector<1x8x8xf32> to vector<8x8xf32>
    %cst_21 = arith.constant dense<0.000000e+00> : vector<8x128xf32>
    %54 = tpu.matmul %53, %0, %cst_21 {dimension_numbers = #tpu.dot_dimension_numbers<[1], [0], [0], [1], [0, 0, 1, 1], [], []>} : vector<8x8xf32>, vector<8x128xf32>, vector<8x128xf32> -> vector<8x128xf32>
    %55 = arith.truncf %51 : vector<8x32xf32> to vector<8x32xbf16>
    %cst_22 = arith.constant dense<0.000000e+00> : vector<8x128xf32>
    %56 = tpu.matmul %55, %1, %cst_22 {dimension_numbers = #tpu.dot_dimension_numbers<[1], [0], [0], [1], [0, 0, 1, 1], [], []>} : vector<8x32xbf16>, vector<32x128xbf16>, vector<8x128xf32> -> vector<8x128xf32>
    %57 = arith.addf %54, %56 : vector<8x128xf32>
    %58 = arith.negf %57 : vector<8x128xf32>
    %59 = math.exp %58 : vector<8x128xf32>
    %cst_23 = arith.constant 1.000000e+00 : f32
    %60 = vector.broadcast %cst_23 : f32 to vector<8x128xf32>
    %61 = arith.addf %60, %59 : vector<8x128xf32>
    %62 = arith.divf %60, %61 : vector<8x128xf32>
    %63 = vector.extract_strided_slice %62 {offsets = [0, 0], sizes = [8, 32], strides = [1, 1]} : vector<8x128xf32> to vector<8x32xf32>
    %64 = vector.extract_strided_slice %62 {offsets = [0, 32], sizes = [8, 32], strides = [1, 1]} : vector<8x128xf32> to vector<8x32xf32>
    %65 = vector.extract_strided_slice %62 {offsets = [0, 64], sizes = [8, 32], strides = [1, 1]} : vector<8x128xf32> to vector<8x32xf32>
    %cst_24 = arith.constant 2.000000e+00 : f32
    %66 = vector.broadcast %cst_24 : f32 to vector<8x32xf32>
    %67 = arith.mulf %65, %66 : vector<8x32xf32>
    %cst_25 = arith.constant 1.000000e+00 : f32
    %68 = vector.broadcast %cst_25 : f32 to vector<8x32xf32>
    %69 = arith.subf %67, %68 : vector<8x32xf32>
    %70 = vector.extract_strided_slice %62 {offsets = [0, 96], sizes = [8, 32], strides = [1, 1]} : vector<8x128xf32> to vector<8x32xf32>
    %71 = arith.mulf %64, %49 : vector<8x32xf32>
    %72 = arith.mulf %63, %69 : vector<8x32xf32>
    %73 = arith.addf %71, %72 : vector<8x32xf32>
    %74 = math.tanh %73 : vector<8x32xf32>
    %75 = arith.mulf %70, %74 : vector<8x32xf32>
    %c3 = arith.constant 3 : index
    %c0_26 = arith.constant 0 : index
    %c0_27 = arith.constant 0 : index
    %76 = vector.load %arg1[%c3, %c0_26, %c0_27] : memref<8x8x8xf32, #tpu.memory_space<vmem>>, vector<1x8x8xf32>
    %77 = vector.shape_cast %76 : vector<1x8x8xf32> to vector<8x8xf32>
    %cst_28 = arith.constant dense<0.000000e+00> : vector<8x128xf32>
    %78 = tpu.matmul %77, %0, %cst_28 {dimension_numbers = #tpu.dot_dimension_numbers<[1], [0], [0], [1], [0, 0, 1, 1], [], []>} : vector<8x8xf32>, vector<8x128xf32>, vector<8x128xf32> -> vector<8x128xf32>
    %79 = arith.truncf %75 : vector<8x32xf32> to vector<8x32xbf16>
    %cst_29 = arith.constant dense<0.000000e+00> : vector<8x128xf32>
    %80 = tpu.matmul %79, %1, %cst_29 {dimension_numbers = #tpu.dot_dimension_numbers<[1], [0], [0], [1], [0, 0, 1, 1], [], []>} : vector<8x32xbf16>, vector<32x128xbf16>, vector<8x128xf32> -> vector<8x128xf32>
    %81 = arith.addf %78, %80 : vector<8x128xf32>
    %82 = arith.negf %81 : vector<8x128xf32>
    %83 = math.exp %82 : vector<8x128xf32>
    %cst_30 = arith.constant 1.000000e+00 : f32
    %84 = vector.broadcast %cst_30 : f32 to vector<8x128xf32>
    %85 = arith.addf %84, %83 : vector<8x128xf32>
    %86 = arith.divf %84, %85 : vector<8x128xf32>
    %87 = vector.extract_strided_slice %86 {offsets = [0, 0], sizes = [8, 32], strides = [1, 1]} : vector<8x128xf32> to vector<8x32xf32>
    %88 = vector.extract_strided_slice %86 {offsets = [0, 32], sizes = [8, 32], strides = [1, 1]} : vector<8x128xf32> to vector<8x32xf32>
    %89 = vector.extract_strided_slice %86 {offsets = [0, 64], sizes = [8, 32], strides = [1, 1]} : vector<8x128xf32> to vector<8x32xf32>
    %cst_31 = arith.constant 2.000000e+00 : f32
    %90 = vector.broadcast %cst_31 : f32 to vector<8x32xf32>
    %91 = arith.mulf %89, %90 : vector<8x32xf32>
    %cst_32 = arith.constant 1.000000e+00 : f32
    %92 = vector.broadcast %cst_32 : f32 to vector<8x32xf32>
    %93 = arith.subf %91, %92 : vector<8x32xf32>
    %94 = vector.extract_strided_slice %86 {offsets = [0, 96], sizes = [8, 32], strides = [1, 1]} : vector<8x128xf32> to vector<8x32xf32>
    %95 = arith.mulf %88, %73 : vector<8x32xf32>
    %96 = arith.mulf %87, %93 : vector<8x32xf32>
    %97 = arith.addf %95, %96 : vector<8x32xf32>
    %98 = math.tanh %97 : vector<8x32xf32>
    %99 = arith.mulf %94, %98 : vector<8x32xf32>
    %c4 = arith.constant 4 : index
    %c0_33 = arith.constant 0 : index
    %c0_34 = arith.constant 0 : index
    %100 = vector.load %arg1[%c4, %c0_33, %c0_34] : memref<8x8x8xf32, #tpu.memory_space<vmem>>, vector<1x8x8xf32>
    %101 = vector.shape_cast %100 : vector<1x8x8xf32> to vector<8x8xf32>
    %cst_35 = arith.constant dense<0.000000e+00> : vector<8x128xf32>
    %102 = tpu.matmul %101, %0, %cst_35 {dimension_numbers = #tpu.dot_dimension_numbers<[1], [0], [0], [1], [0, 0, 1, 1], [], []>} : vector<8x8xf32>, vector<8x128xf32>, vector<8x128xf32> -> vector<8x128xf32>
    %103 = arith.truncf %99 : vector<8x32xf32> to vector<8x32xbf16>
    %cst_36 = arith.constant dense<0.000000e+00> : vector<8x128xf32>
    %104 = tpu.matmul %103, %1, %cst_36 {dimension_numbers = #tpu.dot_dimension_numbers<[1], [0], [0], [1], [0, 0, 1, 1], [], []>} : vector<8x32xbf16>, vector<32x128xbf16>, vector<8x128xf32> -> vector<8x128xf32>
    %105 = arith.addf %102, %104 : vector<8x128xf32>
    %106 = arith.negf %105 : vector<8x128xf32>
    %107 = math.exp %106 : vector<8x128xf32>
    %cst_37 = arith.constant 1.000000e+00 : f32
    %108 = vector.broadcast %cst_37 : f32 to vector<8x128xf32>
    %109 = arith.addf %108, %107 : vector<8x128xf32>
    %110 = arith.divf %108, %109 : vector<8x128xf32>
    %111 = vector.extract_strided_slice %110 {offsets = [0, 0], sizes = [8, 32], strides = [1, 1]} : vector<8x128xf32> to vector<8x32xf32>
    %112 = vector.extract_strided_slice %110 {offsets = [0, 32], sizes = [8, 32], strides = [1, 1]} : vector<8x128xf32> to vector<8x32xf32>
    %113 = vector.extract_strided_slice %110 {offsets = [0, 64], sizes = [8, 32], strides = [1, 1]} : vector<8x128xf32> to vector<8x32xf32>
    %cst_38 = arith.constant 2.000000e+00 : f32
    %114 = vector.broadcast %cst_38 : f32 to vector<8x32xf32>
    %115 = arith.mulf %113, %114 : vector<8x32xf32>
    %cst_39 = arith.constant 1.000000e+00 : f32
    %116 = vector.broadcast %cst_39 : f32 to vector<8x32xf32>
    %117 = arith.subf %115, %116 : vector<8x32xf32>
    %118 = vector.extract_strided_slice %110 {offsets = [0, 96], sizes = [8, 32], strides = [1, 1]} : vector<8x128xf32> to vector<8x32xf32>
    %119 = arith.mulf %112, %97 : vector<8x32xf32>
    %120 = arith.mulf %111, %117 : vector<8x32xf32>
    %121 = arith.addf %119, %120 : vector<8x32xf32>
    %122 = math.tanh %121 : vector<8x32xf32>
    %123 = arith.mulf %118, %122 : vector<8x32xf32>
    %c5 = arith.constant 5 : index
    %c0_40 = arith.constant 0 : index
    %c0_41 = arith.constant 0 : index
    %124 = vector.load %arg1[%c5, %c0_40, %c0_41] : memref<8x8x8xf32, #tpu.memory_space<vmem>>, vector<1x8x8xf32>
    %125 = vector.shape_cast %124 : vector<1x8x8xf32> to vector<8x8xf32>
    %cst_42 = arith.constant dense<0.000000e+00> : vector<8x128xf32>
    %126 = tpu.matmul %125, %0, %cst_42 {dimension_numbers = #tpu.dot_dimension_numbers<[1], [0], [0], [1], [0, 0, 1, 1], [], []>} : vector<8x8xf32>, vector<8x128xf32>, vector<8x128xf32> -> vector<8x128xf32>
    %127 = arith.truncf %123 : vector<8x32xf32> to vector<8x32xbf16>
    %cst_43 = arith.constant dense<0.000000e+00> : vector<8x128xf32>
    %128 = tpu.matmul %127, %1, %cst_43 {dimension_numbers = #tpu.dot_dimension_numbers<[1], [0], [0], [1], [0, 0, 1, 1], [], []>} : vector<8x32xbf16>, vector<32x128xbf16>, vector<8x128xf32> -> vector<8x128xf32>
    %129 = arith.addf %126, %128 : vector<8x128xf32>
    %130 = arith.negf %129 : vector<8x128xf32>
    %131 = math.exp %130 : vector<8x128xf32>
    %cst_44 = arith.constant 1.000000e+00 : f32
    %132 = vector.broadcast %cst_44 : f32 to vector<8x128xf32>
    %133 = arith.addf %132, %131 : vector<8x128xf32>
    %134 = arith.divf %132, %133 : vector<8x128xf32>
    %135 = vector.extract_strided_slice %134 {offsets = [0, 0], sizes = [8, 32], strides = [1, 1]} : vector<8x128xf32> to vector<8x32xf32>
    %136 = vector.extract_strided_slice %134 {offsets = [0, 32], sizes = [8, 32], strides = [1, 1]} : vector<8x128xf32> to vector<8x32xf32>
    %137 = vector.extract_strided_slice %134 {offsets = [0, 64], sizes = [8, 32], strides = [1, 1]} : vector<8x128xf32> to vector<8x32xf32>
    %cst_45 = arith.constant 2.000000e+00 : f32
    %138 = vector.broadcast %cst_45 : f32 to vector<8x32xf32>
    %139 = arith.mulf %137, %138 : vector<8x32xf32>
    %cst_46 = arith.constant 1.000000e+00 : f32
    %140 = vector.broadcast %cst_46 : f32 to vector<8x32xf32>
    %141 = arith.subf %139, %140 : vector<8x32xf32>
    %142 = vector.extract_strided_slice %134 {offsets = [0, 96], sizes = [8, 32], strides = [1, 1]} : vector<8x128xf32> to vector<8x32xf32>
    %143 = arith.mulf %136, %121 : vector<8x32xf32>
    %144 = arith.mulf %135, %141 : vector<8x32xf32>
    %145 = arith.addf %143, %144 : vector<8x32xf32>
    %146 = math.tanh %145 : vector<8x32xf32>
    %147 = arith.mulf %142, %146 : vector<8x32xf32>
    %c6 = arith.constant 6 : index
    %c0_47 = arith.constant 0 : index
    %c0_48 = arith.constant 0 : index
    %148 = vector.load %arg1[%c6, %c0_47, %c0_48] : memref<8x8x8xf32, #tpu.memory_space<vmem>>, vector<1x8x8xf32>
    %149 = vector.shape_cast %148 : vector<1x8x8xf32> to vector<8x8xf32>
    %cst_49 = arith.constant dense<0.000000e+00> : vector<8x128xf32>
    %150 = tpu.matmul %149, %0, %cst_49 {dimension_numbers = #tpu.dot_dimension_numbers<[1], [0], [0], [1], [0, 0, 1, 1], [], []>} : vector<8x8xf32>, vector<8x128xf32>, vector<8x128xf32> -> vector<8x128xf32>
    %151 = arith.truncf %147 : vector<8x32xf32> to vector<8x32xbf16>
    %cst_50 = arith.constant dense<0.000000e+00> : vector<8x128xf32>
    %152 = tpu.matmul %151, %1, %cst_50 {dimension_numbers = #tpu.dot_dimension_numbers<[1], [0], [0], [1], [0, 0, 1, 1], [], []>} : vector<8x32xbf16>, vector<32x128xbf16>, vector<8x128xf32> -> vector<8x128xf32>
    %153 = arith.addf %150, %152 : vector<8x128xf32>
    %154 = arith.negf %153 : vector<8x128xf32>
    %155 = math.exp %154 : vector<8x128xf32>
    %cst_51 = arith.constant 1.000000e+00 : f32
    %156 = vector.broadcast %cst_51 : f32 to vector<8x128xf32>
    %157 = arith.addf %156, %155 : vector<8x128xf32>
    %158 = arith.divf %156, %157 : vector<8x128xf32>
    %159 = vector.extract_strided_slice %158 {offsets = [0, 0], sizes = [8, 32], strides = [1, 1]} : vector<8x128xf32> to vector<8x32xf32>
    %160 = vector.extract_strided_slice %158 {offsets = [0, 32], sizes = [8, 32], strides = [1, 1]} : vector<8x128xf32> to vector<8x32xf32>
    %161 = vector.extract_strided_slice %158 {offsets = [0, 64], sizes = [8, 32], strides = [1, 1]} : vector<8x128xf32> to vector<8x32xf32>
    %cst_52 = arith.constant 2.000000e+00 : f32
    %162 = vector.broadcast %cst_52 : f32 to vector<8x32xf32>
    %163 = arith.mulf %161, %162 : vector<8x32xf32>
    %cst_53 = arith.constant 1.000000e+00 : f32
    %164 = vector.broadcast %cst_53 : f32 to vector<8x32xf32>
    %165 = arith.subf %163, %164 : vector<8x32xf32>
    %166 = vector.extract_strided_slice %158 {offsets = [0, 96], sizes = [8, 32], strides = [1, 1]} : vector<8x128xf32> to vector<8x32xf32>
    %167 = arith.mulf %160, %145 : vector<8x32xf32>
    %168 = arith.mulf %159, %165 : vector<8x32xf32>
    %169 = arith.addf %167, %168 : vector<8x32xf32>
    %170 = math.tanh %169 : vector<8x32xf32>
    %171 = arith.mulf %166, %170 : vector<8x32xf32>
    %c7 = arith.constant 7 : index
    %c0_54 = arith.constant 0 : index
    %c0_55 = arith.constant 0 : index
    %172 = vector.load %arg1[%c7, %c0_54, %c0_55] : memref<8x8x8xf32, #tpu.memory_space<vmem>>, vector<1x8x8xf32>
    %173 = vector.shape_cast %172 : vector<1x8x8xf32> to vector<8x8xf32>
    %cst_56 = arith.constant dense<0.000000e+00> : vector<8x128xf32>
    %174 = tpu.matmul %173, %0, %cst_56 {dimension_numbers = #tpu.dot_dimension_numbers<[1], [0], [0], [1], [0, 0, 1, 1], [], []>} : vector<8x8xf32>, vector<8x128xf32>, vector<8x128xf32> -> vector<8x128xf32>
    %175 = arith.truncf %171 : vector<8x32xf32> to vector<8x32xbf16>
    %cst_57 = arith.constant dense<0.000000e+00> : vector<8x128xf32>
    %176 = tpu.matmul %175, %1, %cst_57 {dimension_numbers = #tpu.dot_dimension_numbers<[1], [0], [0], [1], [0, 0, 1, 1], [], []>} : vector<8x32xbf16>, vector<32x128xbf16>, vector<8x128xf32> -> vector<8x128xf32>
    %177 = arith.addf %174, %176 : vector<8x128xf32>
    %178 = arith.negf %177 : vector<8x128xf32>
    %179 = math.exp %178 : vector<8x128xf32>
    %cst_58 = arith.constant 1.000000e+00 : f32
    %180 = vector.broadcast %cst_58 : f32 to vector<8x128xf32>
    %181 = arith.addf %180, %179 : vector<8x128xf32>
    %182 = arith.divf %180, %181 : vector<8x128xf32>
    %183 = vector.extract_strided_slice %182 {offsets = [0, 0], sizes = [8, 32], strides = [1, 1]} : vector<8x128xf32> to vector<8x32xf32>
    %184 = vector.extract_strided_slice %182 {offsets = [0, 32], sizes = [8, 32], strides = [1, 1]} : vector<8x128xf32> to vector<8x32xf32>
    %185 = vector.extract_strided_slice %182 {offsets = [0, 64], sizes = [8, 32], strides = [1, 1]} : vector<8x128xf32> to vector<8x32xf32>
    %cst_59 = arith.constant 2.000000e+00 : f32
    %186 = vector.broadcast %cst_59 : f32 to vector<8x32xf32>
    %187 = arith.mulf %185, %186 : vector<8x32xf32>
    %cst_60 = arith.constant 1.000000e+00 : f32
    %188 = vector.broadcast %cst_60 : f32 to vector<8x32xf32>
    %189 = arith.subf %187, %188 : vector<8x32xf32>
    %190 = vector.extract_strided_slice %182 {offsets = [0, 96], sizes = [8, 32], strides = [1, 1]} : vector<8x128xf32> to vector<8x32xf32>
    %191 = arith.mulf %184, %169 : vector<8x32xf32>
    %192 = arith.mulf %183, %189 : vector<8x32xf32>
    %193 = arith.addf %191, %192 : vector<8x32xf32>
    %194 = math.tanh %193 : vector<8x32xf32>
    %195 = arith.mulf %190, %194 : vector<8x32xf32>
    %196 = arith.truncf %195 : vector<8x32xf32> to vector<8x32xbf16>
    %c0_61 = arith.constant 0 : index
    %c0_62 = arith.constant 0 : index
    %197 = vector.load %arg4[%c0_61, %c0_62] : memref<32x256xbf16, #tpu.memory_space<vmem>>, vector<32x256xbf16>
    %cst_63 = arith.constant dense<0.000000e+00> : vector<8x256xf32>
    %198 = tpu.matmul %196, %197, %cst_63 {dimension_numbers = #tpu.dot_dimension_numbers<[1], [0], [0], [1], [0, 0, 1, 1], [], []>} : vector<8x32xbf16>, vector<32x256xbf16>, vector<8x256xf32> -> vector<8x256xf32>
    %c0_64 = arith.constant 0 : index
    %c0_65 = arith.constant 0 : index
    %199 = vector.load %arg5[%c0_64, %c0_65] : memref<1x256xf32, #tpu.memory_space<vmem>>, vector<1x256xf32>
    %200 = vector.broadcast %199 : vector<1x256xf32> to vector<8x256xf32>
    %201 = arith.addf %198, %200 : vector<8x256xf32>
    %cst_66 = arith.constant 0.000000e+00 : f32
    %202 = vector.broadcast %cst_66 : f32 to vector<8x256xf32>
    %203 = arith.maximumf %201, %202 : vector<8x256xf32>
    %c0_67 = arith.constant 0 : index
    %c0_68 = arith.constant 0 : index
    %204 = vector.load %arg6[%c0_67, %c0_68] : memref<1x256xf32, #tpu.memory_space<vmem>>, vector<1x256xf32>
    %205 = vector.broadcast %204 : vector<1x256xf32> to vector<8x256xf32>
    %206 = arith.mulf %203, %205 : vector<8x256xf32>
    %cst_69 = arith.constant dense<0.000000e+00> : vector<8xf32>
    %207 = vector.multi_reduction <add>, %206, %cst_69 [1] : vector<8x256xf32> to vector<8xf32>
    %208 = vector.shape_cast %207 : vector<8xf32> to vector<8x1xf32>
    %c0_70 = arith.constant 0 : index
    %c0_71 = arith.constant 0 : index
    %209 = vector.load %arg7[%c0_70, %c0_71] : memref<1x1xf32, #tpu.memory_space<vmem>>, vector<1x1xf32>
    %210 = vector.broadcast %209 : vector<1x1xf32> to vector<8x1xf32>
    %211 = arith.addf %208, %210 : vector<8x1xf32>
    %c0_72 = arith.constant 0 : index
    %c0_73 = arith.constant 0 : index
    %212 = vector.load %arg8[%c0_72, %c0_73] : memref<8x1xf32, #tpu.memory_space<vmem>>, vector<8x1xf32>
    tpu.vector_store %arg8[%c0_72, %c0_73], %211 {strides = array<i32>} : memref<8x1xf32, #tpu.memory_space<vmem>>, vector<8x1xf32>,
    return
  }
  func.func @transform_0(%arg0: i32) -> (i32, i32, i32) {
    %c0_i32 = arith.constant 0 : i32
    %c0_i32_0 = arith.constant 0 : i32
    %c0_i32_1 = arith.constant 0 : i32
    return %c0_i32, %arg0, %c0_i32_0 : i32, i32, i32
  }
  func.func @transform_1(%arg0: i32) -> (i32, i32) {
    %c0_i32 = arith.constant 0 : i32
    %c0_i32_0 = arith.constant 0 : i32
    %c0_i32_1 = arith.constant 0 : i32
    return %c0_i32, %c0_i32_0 : i32, i32
  }
  func.func @transform_2(%arg0: i32) -> (i32, i32) {
    %c0_i32 = arith.constant 0 : i32
    %c0_i32_0 = arith.constant 0 : i32
    %c0_i32_1 = arith.constant 0 : i32
    return %c0_i32, %c0_i32_0 : i32, i32
  }
  func.func @transform_3(%arg0: i32) -> (i32, i32) {
    %c0_i32 = arith.constant 0 : i32
    %c0_i32_0 = arith.constant 0 : i32
    %c0_i32_1 = arith.constant 0 : i32
    return %c0_i32, %c0_i32_0 : i32, i32
  }
  func.func @transform_4(%arg0: i32) -> (i32, i32) {
    %c0_i32 = arith.constant 0 : i32
    %c0_i32_0 = arith.constant 0 : i32
    %c0_i32_1 = arith.constant 0 : i32
    return %c0_i32, %c0_i32_0 : i32, i32
  }
  func.func @transform_5(%arg0: i32) -> (i32, i32) {
    %c0_i32 = arith.constant 0 : i32
    %c0_i32_0 = arith.constant 0 : i32
    %c0_i32_1 = arith.constant 0 : i32
    return %c0_i32, %c0_i32_0 : i32, i32
  }
  func.func @transform_6(%arg0: i32) -> (i32, i32) {
    %c0_i32 = arith.constant 0 : i32
    %c0_i32_0 = arith.constant 0 : i32
    %c0_i32_1 = arith.constant 0 : i32
    return %c0_i32, %c0_i32_0 : i32, i32
  }
  func.func @transform_7(%arg0: i32) -> (i32, i32) {
    %c0_i32 = arith.constant 0 : i32
    %c0_i32_0 = arith.constant 0 : i32
    return %arg0, %c0_i32 : i32, i32
  }
}

</mosaic_0001>

<llo_original>
// kernel: lstm_model_forward.1
$region0: #{lstm_model_forward.1}
  #allocation0 [shape = 'u32[]', space=smem, size = 0x4, offset = 0x4, fixed_abs, tag = 'smem constant byte address 0x4 - core index']
  #allocation1 [shape = 'u32[72,128]{1,0:T(1,128)}', space=vmem, size = 0x9000, scoped, tag = 'internal scratch']
  #allocation2 [shape = 'f32[1,1]{1,0:T(1,128)S(1)}', space=vmem, size = 0x200, scoped, tag = 'scoped memory for lstm_model_forward.1']
  %s0 = inlined_call_operand.vmem [shape: f32[8,8,8], index: 0, kind: input, shape index: {}]
  %s1 = inlined_call_operand.vmem [shape: f32[8,128], index: 1, kind: input, shape index: {}]
  %s2 = inlined_call_operand.vmem [shape: bf16[32,128], index: 2, kind: input, shape index: {}]
  %s3 = inlined_call_operand.vmem [shape: bf16[32,256], index: 3, kind: input, shape index: {}]
  %s4 = inlined_call_operand.vmem [shape: f32[1,256], index: 4, kind: input, shape index: {}]
  %s5 = inlined_call_operand.vmem [shape: f32[1,256], index: 5, kind: input, shape index: {}]
  %s6 = inlined_call_operand.<no memory space> [shape: f32[1,1], index: 6, kind: input, shape index: {}]
  %s7 = inlined_call_operand.vmem [shape: f32[8,1], index: 7, kind: output, shape index: {}]
  %s8 = sld [smem:[#allocation0]]
  $region38: #{lstm_model_forward.1} parent=0
    _
  %s10 = ssub.s32 1, %s8
  %s11 = scalar_select 0, %s10, %s8
  %v12 = vstv %s6
  %13 = vst [vmem:[#allocation2] sm:$0x1] %v12
  // Predicated region
  $region2: #{lstm_model_forward.1} parent=0 // pred_check
    _
  $region3: #{lstm_model_forward.1} parent=0 // pred_check_branch
    %15 = sbr.rel (0) target = $region5
  $region4: #{lstm_model_forward.1} parent=0 // pred_region
    _
  $region5: #{lstm_model_forward.1} parent=0 // pred_fallthru
    _
  // Predicated region
  $region6: #{lstm_model_forward.1} parent=0 // pred_check
    _
  $region7: #{lstm_model_forward.1} parent=0 // pred_check_branch
    %17 = sbr.rel (0) target = $region9
  $region8: #{lstm_model_forward.1} parent=0 // pred_region
    _
  $region9: #{lstm_model_forward.1} parent=0 // pred_fallthru
    _
  // Predicated region
  $region10: #{lstm_model_forward.1} parent=0 // pred_check
    _
  $region11: #{lstm_model_forward.1} parent=0 // pred_check_branch
    %19 = sbr.rel (0) target = $region13
  $region12: #{lstm_model_forward.1} parent=0 // pred_region
    _
  $region13: #{lstm_model_forward.1} parent=0 // pred_fallthru
    _
  // Predicated region
  $region14: #{lstm_model_forward.1} parent=0 // pred_check
    _
  $region15: #{lstm_model_forward.1} parent=0 // pred_check_branch
    %21 = sbr.rel (0) target = $region17
  $region16: #{lstm_model_forward.1} parent=0 // pred_region
    _
  $region17: #{lstm_model_forward.1} parent=0 // pred_fallthru
    _
  // Predicated region
  $region18: #{lstm_model_forward.1} parent=0 // pred_check
    _
  $region19: #{lstm_model_forward.1} parent=0 // pred_check_branch
    %23 = sbr.rel (0) target = $region21
  $region20: #{lstm_model_forward.1} parent=0 // pred_region
    _
  $region21: #{lstm_model_forward.1} parent=0 // pred_fallthru
    _
  // Predicated region
  $region22: #{lstm_model_forward.1} parent=0 // pred_check
    _
  $region23: #{lstm_model_forward.1} parent=0 // pred_check_branch
    %25 = sbr.rel (0) target = $region25
  $region24: #{lstm_model_forward.1} parent=0 // pred_region
    _
  $region25: #{lstm_model_forward.1} parent=0 // pred_fallthru
    _
  // Predicated region
  $region26: #{lstm_model_forward.1} parent=0 // pred_check
    _
  $region27: #{lstm_model_forward.1} parent=0 // pred_check_branch
    %27 = sbr.rel (0) target = $region29
  $region28: #{lstm_model_forward.1} parent=0 // pred_region
    _
  $region29: #{lstm_model_forward.1} parent=0 // pred_fallthru
    _
  %v29 = vld [vmem:[%s1] sm:$0xff]
  %v30 = vld [vmem:[%s2] sm:$0xf]
  %v31 = vld [vmem:[%s2 + $0x4] sm:$0xf]
  %v32 = vld [vmem:[%s2 + $0x8] sm:$0xf]
  %v33 = vld [vmem:[%s2 + $0xc] sm:$0xf]
  %v34 = vld [vmem:[%s0] sm:$0xff]
  %v39 = vunpack.c.l.b16 %v30
  %v40 = vunpack.c.l.b16 %v31
  %v41 = vunpack.c.l.b16 %v32
  %v42 = vunpack.c.l.b16 %v33
  %v43 = vpack.c.b16 %v40, %v39
  %v44 = vpack.c.b16 %v42, %v41
  %vm47 = vcmask 261120
  %v49 = vsel %vm47, 0, 0
  %51 = vmatpush.bf16.msra.mxu0 0
  %52 = vmatpush.bf16.msra.mxu0 0
  %53 = vmatpush.bf16.msra.mxu0 0
  %54 = vmatpush.bf16.msra.mxu0 0
  %55 = vmatpush.bf16.msra.mxu0 0
  %56 = vmatpush.bf16.msra.mxu0 0
  %57 = vmatpush.bf16.msra.mxu0 %v44
  %58 = vmatpush.bf16.msra.mxu0 %v43
  %59 = vmatmul.bf16.gmra.mxu0 %v49
  %v60 = vpop.f32.mrf.mxu0
  %v61 = vadd.f32 0.0, %v60
  %v62 = vpop.f32.mrf.mxu0
  %63 = vdwg.mxu0
  %vm64 = vcmask 64512
  %v66 = vsel %vm64, %v34, 0
  %68 = vmatpush.msra.mxu0 0.0
  %69 = vmatpush.msra.mxu0 0.0
  %70 = vmatpush.msra.mxu0 0.0
  %71 = vmatpush.msra.mxu0 0.0
  %72 = vmatpush.msra.mxu0 0.0
  %73 = vmatpush.msra.mxu0 0.0
  %74 = vmatpush.msra.mxu0 0.0
  %75 = vmatpush.msra.mxu0 0.0
  %76 = vmatpush.msra.mxu0 0.0
  %77 = vmatpush.msra.mxu0 0.0
  %78 = vmatpush.msra.mxu0 0.0
  %79 = vmatpush.msra.mxu0 0.0
  %80 = vmatpush.msra.mxu0 0.0
  %81 = vmatpush.msra.mxu0 0.0
  %82 = vmatpush.msra.mxu0 0.0
  %83 = vmatpush.msra.mxu0 %v29
  %84 = vmatmul.f32.gmra.mxu0 %v66
  %v85 = vpop.f32.mrf.mxu0
  %v86 = vadd.f32 %v61, %v85
  %87 = vdwg.mxu0
  %v88 = vxor.u32 %v86, 2147483648
  %v89 = vmul.f32 %v88, 1.442695
  %v90 = vpow.pop %v89
  %v91 = vadd.f32 %v90, 1.0
  %v92 = vrcp.pop %v91
  %v93 = vmul.f32 %v91, %v92
  %v94 = vsub.f32 1.0, %v93
  %v95 = vmul.f32 %v92, %v94
  %v96 = vadd.f32 %v92, %v95
  %vm97 = vweird.f32 %v91
  %vm98 = vweird.f32 %v92
  %vm99 = vmor %vm97, %vm98
  %v100 = vsel %vm99, %v92, %v96
  %v101 = vand.u32 2147483647, %v91
  %vm102 = vcmp.eq.f32.partialorder %v101, 8.507059e+37
  %v103 = vand.u32 %v91, 2147483648
  %v104 = vor.u32 1.1754944e-38, %v103
  %v105 = vsel %vm102, %v104, %v100
  %v106 = vmul.f32 1.0, %v105
  %v107 = vmul.f32 %v106, 2.0
  %v108 = vsub.f32 %v107, 1.0
  %v109 = vmul.f32 %v106, 0.0
  %111 = vrot.lane.b32.xlu0 %v108, 64
  %v112 = vpop.permute.xlu0 %111
  %v114 = vmul.f32 %v106, %v112
  %116 = vrot.lane.b32.xlu0 %v114, 32
  %v117 = vpop.permute.xlu0 %116
  %v119 = vadd.f32 %v109, %v117
  %v120 = vtanh.pop %v119
  %122 = vrot.lane.b32.xlu0 %v120, 64
  %v123 = vpop.permute.xlu0 %122
  %v125 = vmul.f32 %v106, %v123
  %s126 = scalar_lea.vmem %s0, 8
  %v127 = vld [vmem:[%s126] sm:$0xff]
  %v128 = vpack.c.bf16 %v125, %v125
  %130 = vrot.lane.b32.xlu0 %v128, 32
  %v131 = vpop.permute.xlu0 %130
  %v133 = vsel %vm47, %v131, 0
  %135 = vmatpush.bf16.msra.mxu0 0
  %136 = vmatpush.bf16.msra.mxu0 0
  %137 = vmatpush.bf16.msra.mxu0 0
  %138 = vmatpush.bf16.msra.mxu0 0
  %139 = vmatpush.bf16.msra.mxu0 0
  %140 = vmatpush.bf16.msra.mxu0 0
  %141 = vmatpush.bf16.msra.mxu0 %v44
  %142 = vmatpush.bf16.msra.mxu0 %v43
  %143 = vmatmul.bf16.gmra.mxu0 %v133
  %v144 = vpop.f32.mrf.mxu0
  %v145 = vadd.f32 0.0, %v144
  %v146 = vpop.f32.mrf.mxu0
  %147 = vdwg.mxu0
  %v149 = vsel %vm64, %v127, 0
  %151 = vmatpush.msra.mxu0 0.0
  %152 = vmatpush.msra.mxu0 0.0
  %153 = vmatpush.msra.mxu0 0.0
  %154 = vmatpush.msra.mxu0 0.0
  %155 = vmatpush.msra.mxu0 0.0
  %156 = vmatpush.msra.mxu0 0.0
  %157 = vmatpush.msra.mxu0 0.0
  %158 = vmatpush.msra.mxu0 0.0
  %159 = vmatpush.msra.mxu0 0.0
  %160 = vmatpush.msra.mxu0 0.0
  %161 = vmatpush.msra.mxu0 0.0
  %162 = vmatpush.msra.mxu0 0.0
  %163 = vmatpush.msra.mxu0 0.0
  %164 = vmatpush.msra.mxu0 0.0
  %165 = vmatpush.msra.mxu0 0.0
  %166 = vmatpush.msra.mxu0 %v29
  %167 = vmatmul.f32.gmra.mxu0 %v149
  %v168 = vpop.f32.mrf.mxu0
  %v169 = vadd.f32 %v145, %v168
  %170 = vdwg.mxu0
  %v171 = vxor.u32 %v169, 2147483648
  %v172 = vmul.f32 %v171, 1.442695
  %v173 = vpow.pop %v172
  %v174 = vadd.f32 %v173, 1.0
  %v175 = vrcp.pop %v174
  %v176 = vmul.f32 %v174, %v175
  %v177 = vsub.f32 1.0, %v176
  %v178 = vmul.f32 %v175, %v177
  %v179 = vadd.f32 %v175, %v178
  %vm180 = vweird.f32 %v174
  %vm181 = vweird.f32 %v175
  %vm182 = vmor %vm180, %vm181
  %v183 = vsel %vm182, %v175, %v179
  %v184 = vand.u32 2147483647, %v174
  %vm185 = vcmp.eq.f32.partialorder %v184, 8.507059e+37
  %v186 = vand.u32 %v174, 2147483648
  %v187 = vor.u32 1.1754944e-38, %v186
  %v188 = vsel %vm185, %v187, %v183
  %v189 = vmul.f32 1.0, %v188
  %v190 = vmul.f32 %v189, 2.0
  %v191 = vsub.f32 %v190, 1.0
  %v192 = vmul.f32 %v189, %v119
  %194 = vrot.lane.b32.xlu0 %v191, 64
  %v195 = vpop.permute.xlu0 %194
  %v197 = vmul.f32 %v189, %v195
  %199 = vrot.lane.b32.xlu0 %v197, 32
  %v200 = vpop.permute.xlu0 %199
  %v202 = vadd.f32 %v192, %v200
  %v203 = vtanh.pop %v202
  %205 = vrot.lane.b32.xlu0 %v203, 64
  %v206 = vpop.permute.xlu0 %205
  %v208 = vmul.f32 %v189, %v206
  %s209 = scalar_lea.vmem %s0, 16
  %v210 = vld [vmem:[%s209] sm:$0xff]
  %v211 = vpack.c.bf16 %v208, %v208
  %213 = vrot.lane.b32.xlu0 %v211, 32
  %v214 = vpop.permute.xlu0 %213
  %v216 = vsel %vm47, %v214, 0
  %218 = vmatpush.bf16.msra.mxu0 0
  %219 = vmatpush.bf16.msra.mxu0 0
  %220 = vmatpush.bf16.msra.mxu0 0
  %221 = vmatpush.bf16.msra.mxu0 0
  %222 = vmatpush.bf16.msra.mxu0 0
  %223 = vmatpush.bf16.msra.mxu0 0
  %224 = vmatpush.bf16.msra.mxu0 %v44
  %225 = vmatpush.bf16.msra.mxu0 %v43
  %226 = vmatmul.bf16.gmra.mxu0 %v216
  %v227 = vpop.f32.mrf.mxu0
  %v228 = vadd.f32 0.0, %v227
  %v229 = vpop.f32.mrf.mxu0
  %230 = vdwg.mxu0
  %v232 = vsel %vm64, %v210, 0
  %234 = vmatpush.msra.mxu0 0.0
  %235 = vmatpush.msra.mxu0 0.0
  %236 = vmatpush.msra.mxu0 0.0
  %237 = vmatpush.msra.mxu0 0.0
  %238 = vmatpush.msra.mxu0 0.0
  %239 = vmatpush.msra.mxu0 0.0
  %240 = vmatpush.msra.mxu0 0.0
  %241 = vmatpush.msra.mxu0 0.0
  %242 = vmatpush.msra.mxu0 0.0
  %243 = vmatpush.msra.mxu0 0.0
  %244 = vmatpush.msra.mxu0 0.0
  %245 = vmatpush.msra.mxu0 0.0
  %246 = vmatpush.msra.mxu0 0.0
  %247 = vmatpush.msra.mxu0 0.0
  %248 = vmatpush.msra.mxu0 0.0
  %249 = vmatpush.msra.mxu0 %v29
  %250 = vmatmul.f32.gmra.mxu0 %v232
  %v251 = vpop.f32.mrf.mxu0
  %v252 = vadd.f32 %v228, %v251
  %253 = vdwg.mxu0
  %v254 = vxor.u32 %v252, 2147483648
  %v255 = vmul.f32 %v254, 1.442695
  %v256 = vpow.pop %v255
  %v257 = vadd.f32 %v256, 1.0
  %v258 = vrcp.pop %v257
  %v259 = vmul.f32 %v257, %v258
  %v260 = vsub.f32 1.0, %v259
  %v261 = vmul.f32 %v258, %v260
  %v262 = vadd.f32 %v258, %v261
  %vm263 = vweird.f32 %v257
  %vm264 = vweird.f32 %v258
  %vm265 = vmor %vm263, %vm264
  %v266 = vsel %vm265, %v258, %v262
  %v267 = vand.u32 2147483647, %v257
  %vm268 = vcmp.eq.f32.partialorder %v267, 8.507059e+37
  %v269 = vand.u32 %v257, 2147483648
  %v270 = vor.u32 1.1754944e-38, %v269
  %v271 = vsel %vm268, %v270, %v266
  %v272 = vmul.f32 1.0, %v271
  %v273 = vmul.f32 %v272, 2.0
  %v274 = vsub.f32 %v273, 1.0
  %v275 = vmul.f32 %v272, %v202
  %277 = vrot.lane.b32.xlu0 %v274, 64
  %v278 = vpop.permute.xlu0 %277
  %v280 = vmul.f32 %v272, %v278
  %282 = vrot.lane.b32.xlu0 %v280, 32
  %v283 = vpop.permute.xlu0 %282
  %v285 = vadd.f32 %v275, %v283
  %v286 = vtanh.pop %v285
  %288 = vrot.lane.b32.xlu0 %v286, 64
  %v289 = vpop.permute.xlu0 %288
  %v291 = vmul.f32 %v272, %v289
  %s292 = scalar_lea.vmem %s0, 24
  %v293 = vld [vmem:[%s292] sm:$0xff]
  %v294 = vpack.c.bf16 %v291, %v291
  %296 = vrot.lane.b32.xlu0 %v294, 32
  %v297 = vpop.permute.xlu0 %296
  %v299 = vsel %vm47, %v297, 0
  %301 = vmatpush.bf16.msra.mxu0 0
  %302 = vmatpush.bf16.msra.mxu0 0
  %303 = vmatpush.bf16.msra.mxu0 0
  %304 = vmatpush.bf16.msra.mxu0 0
  %305 = vmatpush.bf16.msra.mxu0 0
  %306 = vmatpush.bf16.msra.mxu0 0
  %307 = vmatpush.bf16.msra.mxu0 %v44
  %308 = vmatpush.bf16.msra.mxu0 %v43
  %309 = vmatmul.bf16.gmra.mxu0 %v299
  %v310 = vpop.f32.mrf.mxu0
  %v311 = vadd.f32 0.0, %v310
  %v312 = vpop.f32.mrf.mxu0
  %313 = vdwg.mxu0
  %v315 = vsel %vm64, %v293, 0
  %317 = vmatpush.msra.mxu0 0.0
  %318 = vmatpush.msra.mxu0 0.0
  %319 = vmatpush.msra.mxu0 0.0
  %320 = vmatpush.msra.mxu0 0.0
  %321 = vmatpush.msra.mxu0 0.0
  %322 = vmatpush.msra.mxu0 0.0
  %323 = vmatpush.msra.mxu0 0.0
  %324 = vmatpush.msra.mxu0 0.0
  %325 = vmatpush.msra.mxu0 0.0
  %326 = vmatpush.msra.mxu0 0.0
  %327 = vmatpush.msra.mxu0 0.0
  %328 = vmatpush.msra.mxu0 0.0
  %329 = vmatpush.msra.mxu0 0.0
  %330 = vmatpush.msra.mxu0 0.0
  %331 = vmatpush.msra.mxu0 0.0
  %332 = vmatpush.msra.mxu0 %v29
  %333 = vmatmul.f32.gmra.mxu0 %v315
  %v334 = vpop.f32.mrf.mxu0
  %v335 = vadd.f32 %v311, %v334
  %336 = vdwg.mxu0
  %v337 = vxor.u32 %v335, 2147483648
  %v338 = vmul.f32 %v337, 1.442695
  %v339 = vpow.pop %v338
  %v340 = vadd.f32 %v339, 1.0
  %v341 = vrcp.pop %v340
  %v342 = vmul.f32 %v340, %v341
  %v343 = vsub.f32 1.0, %v342
  %v344 = vmul.f32 %v341, %v343
  %v345 = vadd.f32 %v341, %v344
  %vm346 = vweird.f32 %v340
  %vm347 = vweird.f32 %v341
  %vm348 = vmor %vm346, %vm347
  %v349 = vsel %vm348, %v341, %v345
  %v350 = vand.u32 2147483647, %v340
  %vm351 = vcmp.eq.f32.partialorder %v350, 8.507059e+37
  %v352 = vand.u32 %v340, 2147483648
  %v353 = vor.u32 1.1754944e-38, %v352
  %v354 = vsel %vm351, %v353, %v349
  %v355 = vmul.f32 1.0, %v354
  %v356 = vmul.f32 %v355, 2.0
  %v357 = vsub.f32 %v356, 1.0
  %v358 = vmul.f32 %v355, %v285
  %360 = vrot.lane.b32.xlu0 %v357, 64
  %v361 = vpop.permute.xlu0 %360
  %v363 = vmul.f32 %v355, %v361
  %365 = vrot.lane.b32.xlu0 %v363, 32
  %v366 = vpop.permute.xlu0 %365
  %v368 = vadd.f32 %v358, %v366
  %v369 = vtanh.pop %v368
  %371 = vrot.lane.b32.xlu0 %v369, 64
  %v372 = vpop.permute.xlu0 %371
  %v374 = vmul.f32 %v355, %v372
  %s375 = scalar_lea.vmem %s0, 32
  %v376 = vld [vmem:[%s375] sm:$0xff]
  %v377 = vpack.c.bf16 %v374, %v374
  %379 = vrot.lane.b32.xlu0 %v377, 32
  %v380 = vpop.permute.xlu0 %379
  %v382 = vsel %vm47, %v380, 0
  %384 = vmatpush.bf16.msra.mxu0 0
  %385 = vmatpush.bf16.msra.mxu0 0
  %386 = vmatpush.bf16.msra.mxu0 0
  %387 = vmatpush.bf16.msra.mxu0 0
  %388 = vmatpush.bf16.msra.mxu0 0
  %389 = vmatpush.bf16.msra.mxu0 0
  %390 = vmatpush.bf16.msra.mxu0 %v44
  %391 = vmatpush.bf16.msra.mxu0 %v43
  %392 = vmatmul.bf16.gmra.mxu0 %v382
  %v393 = vpop.f32.mrf.mxu0
  %v394 = vadd.f32 0.0, %v393
  %v395 = vpop.f32.mrf.mxu0
  %396 = vdwg.mxu0
  %v398 = vsel %vm64, %v376, 0
  %400 = vmatpush.msra.mxu0 0.0
  %401 = vmatpush.msra.mxu0 0.0
  %402 = vmatpush.msra.mxu0 0.0
  %403 = vmatpush.msra.mxu0 0.0
  %404 = vmatpush.msra.mxu0 0.0
  %405 = vmatpush.msra.mxu0 0.0
  %406 = vmatpush.msra.mxu0 0.0
  %407 = vmatpush.msra.mxu0 0.0
  %408 = vmatpush.msra.mxu0 0.0
  %409 = vmatpush.msra.mxu0 0.0
  %410 = vmatpush.msra.mxu0 0.0
  %411 = vmatpush.msra.mxu0 0.0
  %412 = vmatpush.msra.mxu0 0.0
  %413 = vmatpush.msra.mxu0 0.0
  %414 = vmatpush.msra.mxu0 0.0
  %415 = vmatpush.msra.mxu0 %v29
  %416 = vmatmul.f32.gmra.mxu0 %v398
  %v417 = vpop.f32.mrf.mxu0
  %v418 = vadd.f32 %v394, %v417
  %419 = vdwg.mxu0
  %v420 = vxor.u32 %v418, 2147483648
  %v421 = vmul.f32 %v420, 1.442695
  %v422 = vpow.pop %v421
  %v423 = vadd.f32 %v422, 1.0
  %v424 = vrcp.pop %v423
  %v425 = vmul.f32 %v423, %v424
  %v426 = vsub.f32 1.0, %v425
  %v427 = vmul.f32 %v424, %v426
  %v428 = vadd.f32 %v424, %v427
  %vm429 = vweird.f32 %v423
  %vm430 = vweird.f32 %v424
  %vm431 = vmor %vm429, %vm430
  %v432 = vsel %vm431, %v424, %v428
  %v433 = vand.u32 2147483647, %v423
  %vm434 = vcmp.eq.f32.partialorder %v433, 8.507059e+37
  %v435 = vand.u32 %v423, 2147483648
  %v436 = vor.u32 1.1754944e-38, %v435
  %v437 = vsel %vm434, %v436, %v432
  %v438 = vmul.f32 1.0, %v437
  %v439 = vmul.f32 %v438, 2.0
  %v440 = vsub.f32 %v439, 1.0
  %v441 = vmul.f32 %v438, %v368
  %443 = vrot.lane.b32.xlu0 %v440, 64
  %v444 = vpop.permute.xlu0 %443
  %v446 = vmul.f32 %v438, %v444
  %448 = vrot.lane.b32.xlu0 %v446, 32
  %v449 = vpop.permute.xlu0 %448
  %v451 = vadd.f32 %v441, %v449
  %v452 = vtanh.pop %v451
  %454 = vrot.lane.b32.xlu0 %v452, 64
  %v455 = vpop.permute.xlu0 %454
  %v457 = vmul.f32 %v438, %v455
  %s458 = scalar_lea.vmem %s0, 40
  %v459 = vld [vmem:[%s458] sm:$0xff]
  %v460 = vpack.c.bf16 %v457, %v457
  %462 = vrot.lane.b32.xlu0 %v460, 32
  %v463 = vpop.permute.xlu0 %462
  %v465 = vsel %vm47, %v463, 0
  %467 = vmatpush.bf16.msra.mxu0 0
  %468 = vmatpush.bf16.msra.mxu0 0
  %469 = vmatpush.bf16.msra.mxu0 0
  %470 = vmatpush.bf16.msra.mxu0 0
  %471 = vmatpush.bf16.msra.mxu0 0
  %472 = vmatpush.bf16.msra.mxu0 0
  %473 = vmatpush.bf16.msra.mxu0 %v44
  %474 = vmatpush.bf16.msra.mxu0 %v43
  %475 = vmatmul.bf16.gmra.mxu0 %v465
  %v476 = vpop.f32.mrf.mxu0
  %v477 = vadd.f32 0.0, %v476
  %v478 = vpop.f32.mrf.mxu0
  %479 = vdwg.mxu0
  %v481 = vsel %vm64, %v459, 0
  %483 = vmatpush.msra.mxu0 0.0
  %484 = vmatpush.msra.mxu0 0.0
  %485 = vmatpush.msra.mxu0 0.0
  %486 = vmatpush.msra.mxu0 0.0
  %487 = vmatpush.msra.mxu0 0.0
  %488 = vmatpush.msra.mxu0 0.0
  %489 = vmatpush.msra.mxu0 0.0
  %490 = vmatpush.msra.mxu0 0.0
  %491 = vmatpush.msra.mxu0 0.0
  %492 = vmatpush.msra.mxu0 0.0
  %493 = vmatpush.msra.mxu0 0.0
  %494 = vmatpush.msra.mxu0 0.0
  %495 = vmatpush.msra.mxu0 0.0
  %496 = vmatpush.msra.mxu0 0.0
  %497 = vmatpush.msra.mxu0 0.0
  %498 = vmatpush.msra.mxu0 %v29
  %499 = vmatmul.f32.gmra.mxu0 %v481
  %v500 = vpop.f32.mrf.mxu0
  %v501 = vadd.f32 %v477, %v500
  %502 = vdwg.mxu0
  %v503 = vxor.u32 %v501, 2147483648
  %v504 = vmul.f32 %v503, 1.442695
  %v505 = vpow.pop %v504
  %v506 = vadd.f32 %v505, 1.0
  %v507 = vrcp.pop %v506
  %v508 = vmul.f32 %v506, %v507
  %v509 = vsub.f32 1.0, %v508
  %v510 = vmul.f32 %v507, %v509
  %v511 = vadd.f32 %v507, %v510
  %vm512 = vweird.f32 %v506
  %vm513 = vweird.f32 %v507
  %vm514 = vmor %vm512, %vm513
  %v515 = vsel %vm514, %v507, %v511
  %v516 = vand.u32 2147483647, %v506
  %vm517 = vcmp.eq.f32.partialorder %v516, 8.507059e+37
  %v518 = vand.u32 %v506, 2147483648
  %v519 = vor.u32 1.1754944e-38, %v518
  %v520 = vsel %vm517, %v519, %v515
  %v521 = vmul.f32 1.0, %v520
  %v522 = vmul.f32 %v521, 2.0
  %v523 = vsub.f32 %v522, 1.0
  %v524 = vmul.f32 %v521, %v451
  %526 = vrot.lane.b32.xlu0 %v523, 64
  %v527 = vpop.permute.xlu0 %526
  %v529 = vmul.f32 %v521, %v527
  %531 = vrot.lane.b32.xlu0 %v529, 32
  %v532 = vpop.permute.xlu0 %531
  %v534 = vadd.f32 %v524, %v532
  %v535 = vtanh.pop %v534
  %537 = vrot.lane.b32.xlu0 %v535, 64
  %v538 = vpop.permute.xlu0 %537
  %v540 = vmul.f32 %v521, %v538
  %s541 = scalar_lea.vmem %s0, 48
  %v542 = vld [vmem:[%s541] sm:$0xff]
  %v543 = vpack.c.bf16 %v540, %v540
  %545 = vrot.lane.b32.xlu0 %v543, 32
  %v546 = vpop.permute.xlu0 %545
  %v548 = vsel %vm47, %v546, 0
  %550 = vmatpush.bf16.msra.mxu0 0
  %551 = vmatpush.bf16.msra.mxu0 0
  %552 = vmatpush.bf16.msra.mxu0 0
  %553 = vmatpush.bf16.msra.mxu0 0
  %554 = vmatpush.bf16.msra.mxu0 0
  %555 = vmatpush.bf16.msra.mxu0 0
  %556 = vmatpush.bf16.msra.mxu0 %v44
  %557 = vmatpush.bf16.msra.mxu0 %v43
  %558 = vmatmul.bf16.gmra.mxu0 %v548
  %v559 = vpop.f32.mrf.mxu0
  %v560 = vadd.f32 0.0, %v559
  %v561 = vpop.f32.mrf.mxu0
  %562 = vdwg.mxu0
  %v564 = vsel %vm64, %v542, 0
  %566 = vmatpush.msra.mxu0 0.0
  %567 = vmatpush.msra.mxu0 0.0
  %568 = vmatpush.msra.mxu0 0.0
  %569 = vmatpush.msra.mxu0 0.0
  %570 = vmatpush.msra.mxu0 0.0
  %571 = vmatpush.msra.mxu0 0.0
  %572 = vmatpush.msra.mxu0 0.0
  %573 = vmatpush.msra.mxu0 0.0
  %574 = vmatpush.msra.mxu0 0.0
  %575 = vmatpush.msra.mxu0 0.0
  %576 = vmatpush.msra.mxu0 0.0
  %577 = vmatpush.msra.mxu0 0.0
  %578 = vmatpush.msra.mxu0 0.0
  %579 = vmatpush.msra.mxu0 0.0
  %580 = vmatpush.msra.mxu0 0.0
  %581 = vmatpush.msra.mxu0 %v29
  %582 = vmatmul.f32.gmra.mxu0 %v564
  %v583 = vpop.f32.mrf.mxu0
  %v584 = vadd.f32 %v560, %v583
  %585 = vdwg.mxu0
  %v586 = vxor.u32 %v584, 2147483648
  %v587 = vmul.f32 %v586, 1.442695
  %v588 = vpow.pop %v587
  %v589 = vadd.f32 %v588, 1.0
  %v590 = vrcp.pop %v589
  %v591 = vmul.f32 %v589, %v590
  %v592 = vsub.f32 1.0, %v591
  %v593 = vmul.f32 %v590, %v592
  %v594 = vadd.f32 %v590, %v593
  %vm595 = vweird.f32 %v589
  %vm596 = vweird.f32 %v590
  %vm597 = vmor %vm595, %vm596
  %v598 = vsel %vm597, %v590, %v594
  %v599 = vand.u32 2147483647, %v589
  %vm600 = vcmp.eq.f32.partialorder %v599, 8.507059e+37
  %v601 = vand.u32 %v589, 2147483648
  %v602 = vor.u32 1.1754944e-38, %v601
  %v603 = vsel %vm600, %v602, %v598
  %v604 = vmul.f32 1.0, %v603
  %v605 = vmul.f32 %v604, 2.0
  %v606 = vsub.f32 %v605, 1.0
  %v607 = vmul.f32 %v604, %v534
  %609 = vrot.lane.b32.xlu0 %v606, 64
  %v610 = vpop.permute.xlu0 %609
  %v612 = vmul.f32 %v604, %v610
  %614 = vrot.lane.b32.xlu0 %v612, 32
  %v615 = vpop.permute.xlu0 %614
  %v617 = vadd.f32 %v607, %v615
  %v618 = vtanh.pop %v617
  %620 = vrot.lane.b32.xlu0 %v618, 64
  %v621 = vpop.permute.xlu0 %620
  %v623 = vmul.f32 %v604, %v621
  %s624 = scalar_lea.vmem %s0, 56
  %v625 = vld [vmem:[%s624] sm:$0xff]
  %v626 = vpack.c.bf16 %v623, %v623
  %628 = vrot.lane.b32.xlu0 %v626, 32
  %v629 = vpop.permute.xlu0 %628
  %v631 = vsel %vm47, %v629, 0
  %633 = vmatpush.bf16.msra.mxu0 0
  %634 = vmatpush.bf16.msra.mxu0 0
  %635 = vmatpush.bf16.msra.mxu0 0
  %636 = vmatpush.bf16.msra.mxu0 0
  %637 = vmatpush.bf16.msra.mxu0 0
  %638 = vmatpush.bf16.msra.mxu0 0
  %639 = vmatpush.bf16.msra.mxu0 %v44
  %640 = vmatpush.bf16.msra.mxu0 %v43
  %641 = vmatmul.bf16.gmra.mxu0 %v631
  %v642 = vpop.f32.mrf.mxu0
  %v643 = vadd.f32 0.0, %v642
  %v644 = vpop.f32.mrf.mxu0
  %645 = vdwg.mxu0
  %v647 = vsel %vm64, %v625, 0
  %649 = vmatpush.msra.mxu0 0.0
  %650 = vmatpush.msra.mxu0 0.0
  %651 = vmatpush.msra.mxu0 0.0
  %652 = vmatpush.msra.mxu0 0.0
  %653 = vmatpush.msra.mxu0 0.0
  %654 = vmatpush.msra.mxu0 0.0
  %655 = vmatpush.msra.mxu0 0.0
  %656 = vmatpush.msra.mxu0 0.0
  %657 = vmatpush.msra.mxu0 0.0
  %658 = vmatpush.msra.mxu0 0.0
  %659 = vmatpush.msra.mxu0 0.0
  %660 = vmatpush.msra.mxu0 0.0
  %661 = vmatpush.msra.mxu0 0.0
  %662 = vmatpush.msra.mxu0 0.0
  %663 = vmatpush.msra.mxu0 0.0
  %664 = vmatpush.msra.mxu0 %v29
  %665 = vmatmul.f32.gmra.mxu0 %v647
  %v666 = vpop.f32.mrf.mxu0
  %v667 = vadd.f32 %v643, %v666
  %668 = vdwg.mxu0
  %v669 = vxor.u32 %v667, 2147483648
  %v670 = vmul.f32 %v669, 1.442695
  %v671 = vpow.pop %v670
  %v672 = vadd.f32 %v671, 1.0
  %v673 = vrcp.pop %v672
  %v674 = vmul.f32 %v672, %v673
  %v675 = vsub.f32 1.0, %v674
  %v676 = vmul.f32 %v673, %v675
  %v677 = vadd.f32 %v673, %v676
  %vm678 = vweird.f32 %v672
  %vm679 = vweird.f32 %v673
  %vm680 = vmor %vm678, %vm679
  %v681 = vsel %vm680, %v673, %v677
  %v682 = vand.u32 2147483647, %v672
  %vm683 = vcmp.eq.f32.partialorder %v682, 8.507059e+37
  %v684 = vand.u32 %v672, 2147483648
  %v685 = vor.u32 1.1754944e-38, %v684
  %v686 = vsel %vm683, %v685, %v681
  %v687 = vmul.f32 1.0, %v686
  %v688 = vmul.f32 %v687, 2.0
  %v689 = vsub.f32 %v688, 1.0
  %v690 = vmul.f32 %v687, %v617
  %692 = vrot.lane.b32.xlu0 %v689, 64
  %v693 = vpop.permute.xlu0 %692
  %v695 = vmul.f32 %v687, %v693
  %697 = vrot.lane.b32.xlu0 %v695, 32
  %v698 = vpop.permute.xlu0 %697
  %v700 = vadd.f32 %v690, %v698
  %v701 = vtanh.pop %v700
  %703 = vrot.lane.b32.xlu0 %v701, 64
  %v704 = vpop.permute.xlu0 %703
  %v706 = vmul.f32 %v687, %v704
  %v707 = vpack.c.bf16 %v706, %v706
  %v708 = vld [vmem:[%s3] sm:$0xff]
  %v709 = vld [vmem:[%s3 + $0x8] sm:$0xff]
  %v710 = vld [vmem:[%s3 + $0x10] sm:$0xff]
  %v711 = vld [vmem:[%s3 + $0x18] sm:$0xff]
  %v712 = vld [vmem:[%s4] sm:$0x3]
  %v714 = vperm.slane %v712, 0
  %v715 = vperm.slane %v712, 1
  %719 = vrot.lane.b32.xlu0 %v707, 32
  %v720 = vpop.permute.xlu0 %719
  %v725 = vunpack.c.l.b16 %v708
  %v726 = vunpack.c.h.b16 %v708
  %v727 = vunpack.c.l.b16 %v709
  %v728 = vunpack.c.h.b16 %v709
  %v729 = vunpack.c.l.b16 %v710
  %v730 = vunpack.c.h.b16 %v710
  %v731 = vunpack.c.l.b16 %v711
  %v732 = vunpack.c.h.b16 %v711
  %v733 = vpack.c.b16 %v727, %v725
  %v734 = vpack.c.b16 %v728, %v726
  %v735 = vpack.c.b16 %v731, %v729
  %v736 = vpack.c.b16 %v732, %v730
  %v742 = vsel %vm47, %v720, 0
  %744 = vmatpush.bf16.msra.mxu0 0
  %745 = vmatpush.bf16.msra.mxu0 0
  %746 = vmatpush.bf16.msra.mxu0 0
  %747 = vmatpush.bf16.msra.mxu0 0
  %748 = vmatpush.bf16.msra.mxu0 0
  %749 = vmatpush.bf16.msra.mxu0 0
  %750 = vmatpush.bf16.msra.mxu0 %v735
  %751 = vmatpush.bf16.msra.mxu0 %v733
  %752 = vmatmul.bf16.gmra.mxu0 %v742
  %v753 = vpop.f32.mrf.mxu0
  %v754 = vadd.f32 %v714, %v753
  %v755 = vpop.f32.mrf.mxu0
  %756 = vdwg.mxu0
  %757 = vmatpush.bf16.msra.mxu0 0
  %758 = vmatpush.bf16.msra.mxu0 0
  %759 = vmatpush.bf16.msra.mxu0 0
  %760 = vmatpush.bf16.msra.mxu0 0
  %761 = vmatpush.bf16.msra.mxu0 0
  %762 = vmatpush.bf16.msra.mxu0 0
  %763 = vmatpush.bf16.msra.mxu0 %v736
  %764 = vmatpush.bf16.msra.mxu0 %v734
  %765 = vmatmul.bf16.gmra.mxu0 %v742
  %v766 = vpop.f32.mrf.mxu0
  %v767 = vadd.f32 %v715, %v766
  %v768 = vpop.f32.mrf.mxu0
  %769 = vdwg.mxu0
  %v770 = vmax.f32 %v754, 0.0
  %v771 = vmax.f32 %v767, 0.0
  %v772 = vld [vmem:[%s5] sm:$0x3]
  %v774 = vperm.slane %v772, 0
  %v775 = vperm.slane %v772, 1
  %v778 = vmul.f32 %v770, %v774
  %v779 = vmul.f32 %v771, %v775
  %v780 = vadd.f32 %v778, %v779
  %781 = vadd.xlane.f32.xlu0 %v780
  %v782 = vpop.xlane.xlu0 %781
  %v783 = vld [vmem:[#allocation2] sm:$0x1]
  %v785 = vperm.slane %v783, 0
  %v787 = vadd.f32 %v782, %v785
  %vm788 = vcmask 7168
  %789 = vst.msk [vmem:[%s7] sm:$0xff] %vm788, %v787
  // Predicated region
  $region30: #{lstm_model_forward.1} parent=0 // pred_check
    _
  $region31: #{lstm_model_forward.1} parent=0 // pred_check_branch
    %791 = sbr.rel (0) target = $region33
  $region32: #{lstm_model_forward.1} parent=0 // pred_region
    _
  $region33: #{lstm_model_forward.1} parent=0 // pred_fallthru
    _
  // Predicated region
  $region34: #{lstm_model_forward.1} parent=0 // pred_check
    _
  $region35: #{lstm_model_forward.1} parent=0 // pred_check_branch
    %793 = sbr.rel (0) target = $region37
  $region36: #{lstm_model_forward.1} parent=0 // pred_region
    _
  $region37: #{lstm_model_forward.1} parent=0 // pred_fallthru
    _

</llo_original>
